<compile_context>
chip_gen: v6e
topology: v6e:2x2x1
jax: 0.10.0
libtpu: 0.0.40
codegen_flags: <defaults>
</compile_context>

<pallas_src>
import functools

import jax
import jax.numpy as jnp
from jax.experimental import pallas as pl
from jax.experimental.pallas import tpu as pltpu


def _save_cube_kernel(x_ref, w_ref, b_ref, out_ref, saved_ref, *, cout, csave):
    # x_ref:     (bN, Cin, T)        channel-major spatial tile(s), lane-dense last dim
    # w_ref:     (Cout+Csave, Cin)   concatenated [W_pre^T ; (W_pre @ W_save)^T]
    # b_ref:     (Cout+Csave, 1)     concatenated [b_pre^T ; (b_pre @ W_save + b_save)^T]
    # out_ref:   (bN, Cout, T)       = post_cube(pre_cube(x)), post_cube = identity
    # saved_ref: (bN, Csave, T)      = save_cube(pre_cube(x)), folded into one matmul
    w = w_ref[...]
    b = b_ref[...]
    bn = x_ref.shape[0]
    for i in range(bn):  # static, small (<=16): unrolled channel matmuls per batch item
        y = jnp.dot(w, x_ref[i], preferred_element_type=jnp.float32)
        y = y + b  # (Cout+Csave, 1) broadcasts over lanes; f32 accumulate
        out_ref[i] = y[:cout].astype(out_ref.dtype)
        saved_ref[i] = y[cout:cout + csave].astype(saved_ref.dtype)


def _plan_tiles(n, hw, total_ch, itemsize, target_bytes, max_tile_hw=1 << 17, max_bn=16):
    """Pick (bN, tile_hw) so each grid step moves ~target_bytes of HBM traffic,
    the spatial tile is lane-dense (multiple of 128 or full extent), the per-step
    footprint stays within every generation's scoped VMEM, and — when splittable —
    the grid has at least 2 steps so both v7x TensorCores get work."""
    target_pix = max(128, target_bytes // (total_ch * itemsize))
    if hw <= target_pix:
        tile_hw = hw                                             # full-extent block: always legal
    else:
        tile_hw = max(128, (min(target_pix, max_tile_hw) // 128) * 128)
    bn = max(1, min(n, max_bn, target_pix // tile_hw))

    def n_steps(bn_, t_):
        return pl.cdiv(n, bn_) * pl.cdiv(hw, t_)

    while n_steps(bn, tile_hw) < 2:
        if bn > 1:
            bn = (bn + 1) // 2
        elif tile_hw > 128 and hw > 128:
            tile_hw = max(128, ((tile_hw // 2 + 127) // 128) * 128)
        else:
            break  # nothing left to split (single tiny tile)
    return bn, tile_hw


def save_cube_forward(x_nchw, w_pre, b_pre, w_save, b_save, *,
                      io_dtype=None, target_bytes_per_step=4 << 20):
    """x_nchw: [N, Cin, H, W]. Returns (out [N, Cout, H, W], saved [N, Csave, H, W]).

    w_pre: [Cin, Cout], b_pre: [1, Cout], w_save: [Cout, Csave], b_save: [1, Csave].
    io_dtype: optional dtype (e.g. jnp.bfloat16) for kernel I/O — halves HBM traffic;
              the kernel always accumulates in f32.
    """
    N, Cin, H, W = x_nchw.shape
    Cout = w_pre.shape[1]
    Csave = w_save.shape[1]
    HW = H * W

    dtype = jnp.dtype(io_dtype) if io_dtype is not None else x_nchw.dtype
    itemsize = jnp.dtype(dtype).itemsize

    # --- fold save_cube through pre_cube (tiny matmuls, done once, in f32) ---
    #     save_cube(pre_cube(x)) = x @ (W_pre @ W_save) + (b_pre @ W_save + b_save)
    hp = jax.lax.Precision.HIGHEST
    f32 = jnp.float32
    w_save_fused = jnp.dot(w_pre.astype(f32), w_save.astype(f32), precision=hp)       # (Cin, Csave)
    b_save_fused = jnp.dot(b_pre.astype(f32), w_save.astype(f32), precision=hp) \
        + b_save.astype(f32)                                                           # (1, Csave)

    # Channel-major orientation, concatenated so the kernel does ONE dot per tile.
    w_cat = jnp.concatenate(
        [jnp.transpose(w_pre.astype(f32)), jnp.transpose(w_save_fused)], axis=0
    ).astype(dtype)                                                                    # (Cout+Csave, Cin)
    b_cat = jnp.concatenate(
        [jnp.transpose(b_pre.astype(f32)), jnp.transpose(b_save_fused)], axis=0
    ).astype(dtype)                                                                    # (Cout+Csave, 1)

    # NCHW viewed as (N, Cin, H*W): contiguous reshape, no transpose pass.
    x_3d = x_nchw.reshape(N, Cin, HW).astype(dtype)

    bn, tile_hw = _plan_tiles(N, HW, Cin + Cout + Csave, itemsize, target_bytes_per_step)
    grid = (pl.cdiv(N, bn), pl.cdiv(HW, tile_hw))

    cost = pl.CostEstimate(
        flops=2 * N * HW * Cin * (Cout + Csave),
        transcendentals=0,
        bytes_accessed=N * HW * (Cin + Cout + Csave) * itemsize,
    )

    kernel = functools.partial(_save_cube_kernel, cout=Cout, csave=Csave)

    out_3d, saved_3d = pl.pallas_call(
        kernel,
        out_shape=(
            jax.ShapeDtypeStruct((N, Cout, HW), dtype),
            jax.ShapeDtypeStruct((N, Csave, HW), dtype),
        ),
        grid_spec=pltpu.PrefetchScalarGridSpec(
            num_scalar_prefetch=0,
            grid=grid,
            in_specs=[
                # x tiles: (bN, Cin, tile_hw), ragged edges handled by the cdiv grid.
                pl.BlockSpec((bn, Cin, tile_hw), lambda nb, hb: (nb, 0, hb)),
                # resident tiny weights / biases (full-extent blocks)
                pl.BlockSpec((Cout + Csave, Cin), lambda nb, hb: (0, 0)),
                pl.BlockSpec((Cout + Csave, 1), lambda nb, hb: (0, 0)),
            ],
            out_specs=[
                pl.BlockSpec((bn, Cout, tile_hw), lambda nb, hb: (nb, 0, hb)),
                pl.BlockSpec((bn, Csave, tile_hw), lambda nb, hb: (nb, 0, hb)),
            ],
        ),
        compiler_params=pltpu.CompilerParams(
            dimension_semantics=("parallel", "parallel"),
            vmem_limit_bytes=32 << 20,  # raises v5e's 16 MiB default; default on v6e/v7x
        ),
        cost_estimate=cost,
    )(x_3d, w_cat, b_cat)

    # (N, C, H*W) -> (N, C, H, W): contiguous reshape, no transpose.
    return out_3d.reshape(N, Cout, H, W), saved_3d.reshape(N, Csave, H, W)


if __name__ == "__main__":
    # SaveCube(in_channels=4, out_channels=8, save_out_channels=4, ndim=2,
    #          pre_cube=1x1 conv, post_cube=None, save_cube=1x1 conv)
    N, Cin, H, W = 2, 4, 16, 16
    Cout, Csave = 8, 4

    key = jax.random.PRNGKey(0)
    kx, kw1, kb1, kw2, kb2 = jax.random.split(key, 5)

    x = jax.random.normal(kx, (N, Cin, H, W), dtype=jnp.float32)
    w_pre = jax.random.normal(kw1, (Cin, Cout), dtype=jnp.float32) * 0.1
    b_pre = jax.random.normal(kb1, (1, Cout), dtype=jnp.float32) * 0.1
    w_save = jax.random.normal(kw2, (Cout, Csave), dtype=jnp.float32) * 0.1
    b_save = jax.random.normal(kb2, (1, Csave), dtype=jnp.float32) * 0.1

    # Pure-JAX reference (literal two-step module semantics, high precision).
    hp = jax.lax.Precision.HIGHEST
    pre_ref = jnp.einsum("nchw,cd->ndhw", x, w_pre, precision=hp) \
        + b_pre[0][None, :, None, None]
    out_ref = pre_ref  # post_cube = identity
    saved_ref = jnp.einsum("ndhw,ds->nshw", pre_ref, w_save, precision=hp) \
        + b_save[0][None, :, None, None]

    # --- f32 I/O path (module-faithful dtype) ---
    out, saved = save_cube_forward(x, w_pre, b_pre, w_save, b_save)
    jax.block_until_ready((out, saved))
    assert out.shape == (N, Cout, H, W) and saved.shape == (N, Csave, H, W)
    assert jnp.allclose(out, out_ref, atol=1e-4, rtol=1e-4)
    assert jnp.allclose(saved, saved_ref, atol=1e-4, rtol=1e-4)

    # --- bf16 I/O path (halves HBM traffic; kernel still accumulates in f32) ---
    out_bf, saved_bf = save_cube_forward(x, w_pre, b_pre, w_save, b_save,
                                         io_dtype=jnp.bfloat16)
    jax.block_until_ready((out_bf, saved_bf))
    assert out_bf.dtype == jnp.bfloat16 and saved_bf.dtype == jnp.bfloat16
    assert jnp.allclose(out_bf.astype(jnp.float32), out_ref, atol=5e-2, rtol=5e-2)
    assert jnp.allclose(saved_bf.astype(jnp.float32), saved_ref, atol=5e-2, rtol=5e-2)

    print("KERNEL_OK")
</pallas_src>

<mosaic_0001>
module attributes {stable_mosaic.version = 11 : i64} {
  func.func @_save_cube_kernel(%arg0: i32, %arg1: i32, %arg2: memref<1x4x256xf32, #tpu.memory_space<vmem>>, %arg3: memref<12x4xf32, #tpu.memory_space<vmem>>, %arg4: memref<12x1xf32, #tpu.memory_space<vmem>>, %arg5: memref<1x8x256xf32, #tpu.memory_space<vmem>>, %arg6: memref<1x4x256xf32, #tpu.memory_space<vmem>>) attributes {dimension_semantics = [#tpu.dimension_semantics<parallel>, #tpu.dimension_semantics<parallel>], iteration_bounds = array<i64: 2, 1>, scalar_prefetch = 0 : i64, scratch_operands = 0 : i64, tpu.core_type = #tpu.core_type<tc>, window_params = [{transform_indices = @transform_0, window_bounds = array<i64: 1, 4, 256>}, {pipeline_mode = #tpu.pipeline_mode<synchronous>, transform_indices = @transform_1, window_bounds = array<i64: 12, 4>}, {pipeline_mode = #tpu.pipeline_mode<synchronous>, transform_indices = @transform_2, window_bounds = array<i64: 12, 1>}, {transform_indices = @transform_3, window_bounds = array<i64: 1, 8, 256>}, {transform_indices = @transform_4, window_bounds = array<i64: 1, 4, 256>}]} {
    %c0 = arith.constant 0 : index
    %c0_0 = arith.constant 0 : index
    %0 = vector.load %arg3[%c0, %c0_0] : memref<12x4xf32, #tpu.memory_space<vmem>>, vector<12x4xf32>
    %c0_1 = arith.constant 0 : index
    %c0_2 = arith.constant 0 : index
    %1 = vector.load %arg4[%c0_1, %c0_2] : memref<12x1xf32, #tpu.memory_space<vmem>>, vector<12x1xf32>
    %c0_3 = arith.constant 0 : index
    %c0_4 = arith.constant 0 : index
    %c0_5 = arith.constant 0 : index
    %2 = vector.load %arg2[%c0_3, %c0_4, %c0_5] : memref<1x4x256xf32, #tpu.memory_space<vmem>>, vector<1x4x256xf32>
    %3 = vector.shape_cast %2 : vector<1x4x256xf32> to vector<4x256xf32>
    %cst = arith.constant dense<0.000000e+00> : vector<12x256xf32>
    %4 = tpu.matmul %0, %3, %cst {dimension_numbers = #tpu.dot_dimension_numbers<[1], [0], [0], [1], [0, 0, 1, 1], [], []>} : vector<12x4xf32>, vector<4x256xf32>, vector<12x256xf32> -> vector<12x256xf32>
    %5 = vector.broadcast %1 : vector<12x1xf32> to vector<12x256xf32>
    %6 = arith.addf %4, %5 : vector<12x256xf32>
    %7 = vector.extract_strided_slice %6 {offsets = [0, 0], sizes = [8, 256], strides = [1, 1]} : vector<12x256xf32> to vector<8x256xf32>
    %c0_6 = arith.constant 0 : index
    %c0_7 = arith.constant 0 : index
    %c0_8 = arith.constant 0 : index
    %8 = vector.load %arg5[%c0_6, %c0_7, %c0_8] : memref<1x8x256xf32, #tpu.memory_space<vmem>>, vector<1x8x256xf32>
    %9 = vector.shape_cast %8 : vector<1x8x256xf32> to vector<8x256xf32>
    %10 = vector.shape_cast %7 : vector<8x256xf32> to vector<1x8x256xf32>
    tpu.vector_store %arg5[%c0_6, %c0_7, %c0_8], %10 {strides = array<i32>} : memref<1x8x256xf32, #tpu.memory_space<vmem>>, vector<1x8x256xf32>,
    %11 = vector.extract_strided_slice %6 {offsets = [8, 0], sizes = [4, 256], strides = [1, 1]} : vector<12x256xf32> to vector<4x256xf32>
    %c0_9 = arith.constant 0 : index
    %c0_10 = arith.constant 0 : index
    %c0_11 = arith.constant 0 : index
    %12 = vector.load %arg6[%c0_9, %c0_10, %c0_11] : memref<1x4x256xf32, #tpu.memory_space<vmem>>, vector<1x4x256xf32>
    %13 = vector.shape_cast %12 : vector<1x4x256xf32> to vector<4x256xf32>
    %14 = vector.shape_cast %11 : vector<4x256xf32> to vector<1x4x256xf32>
    tpu.vector_store %arg6[%c0_9, %c0_10, %c0_11], %14 {strides = array<i32>} : memref<1x4x256xf32, #tpu.memory_space<vmem>>, vector<1x4x256xf32>,
    return
  }
  func.func @transform_0(%arg0: i32, %arg1: i32) -> (i32, i32, i32) {
    %c0_i32 = arith.constant 0 : i32
    %c0_i32_0 = arith.constant 0 : i32
    return %arg0, %c0_i32, %arg1 : i32, i32, i32
  }
  func.func @transform_1(%arg0: i32, %arg1: i32) -> (i32, i32) {
    %c0_i32 = arith.constant 0 : i32
    %c0_i32_0 = arith.constant 0 : i32
    %c0_i32_1 = arith.constant 0 : i32
    return %c0_i32, %c0_i32_0 : i32, i32
  }
  func.func @transform_2(%arg0: i32, %arg1: i32) -> (i32, i32) {
    %c0_i32 = arith.constant 0 : i32
    %c0_i32_0 = arith.constant 0 : i32
    %c0_i32_1 = arith.constant 0 : i32
    return %c0_i32, %c0_i32_0 : i32, i32
  }
  func.func @transform_3(%arg0: i32, %arg1: i32) -> (i32, i32, i32) {
    %c0_i32 = arith.constant 0 : i32
    %c0_i32_0 = arith.constant 0 : i32
    return %arg0, %c0_i32, %arg1 : i32, i32, i32
  }
  func.func @transform_4(%arg0: i32, %arg1: i32) -> (i32, i32, i32) {
    %c0_i32 = arith.constant 0 : i32
    %c0_i32_0 = arith.constant 0 : i32
    return %arg0, %c0_i32, %arg1 : i32, i32, i32
  }
}

</mosaic_0001>

<llo_original>
// kernel: tpu_custom_call.1
$region0: #{tpu_custom_call.1}
  #allocation0 [shape = 'u32[]', space=smem, size = 0x4, offset = 0x4, fixed_abs, tag = 'smem constant byte address 0x4 - core index']
  #allocation1 [shape = 'u32[144,128]{1,0:T(1,128)}', space=vmem, size = 0x12000, scoped, tag = 'internal scratch']
  %s0 = inlined_call_operand.vmem [shape: f32[2,4,256], index: 0, kind: input, shape index: {}]
  %s1 = inlined_call_operand.vmem [shape: f32[12,4], index: 1, kind: input, shape index: {}]
  %s2 = inlined_call_operand.vmem [shape: f32[12,1], index: 2, kind: input, shape index: {}]
  %s3 = inlined_call_operand.hbm [shape: f32[2,8,256], index: 3, kind: output, shape index: {0}]
  %s4 = inlined_call_operand.hbm [shape: f32[2,4,256], index: 4, kind: output, shape index: {1}]
  %5 = xla_tuple %s3, %s4
  %s6 = sld [smem:[#allocation0]]
  $region53: #{tpu_custom_call.1} parent=0
    _
  %s8 = ssub.s32 1, %s6
  %s9 = scalar_select 0, %s8, %s6
  $region1: #{tpu_custom_call.1} parent=0
    #allocation2 [shape = 'u8[16384]{0}', space=vmem, size = 0x4000, scoped, tag = 'output window, operand 0']
    #allocation3 [shape = 's32[2]{0}', space=sflag, size = 0x8, scoped, tag = 'scoped memory for tpu_custom_call.1']
    #allocation4 [shape = 'u8[8192]{0}', space=vmem, size = 0x2000, scoped, tag = 'output window, operand 1']
    #allocation5 [shape = 's32[2]{0}', space=sflag, size = 0x8, scoped, tag = 'scoped memory for tpu_custom_call.1']
    %10 = vsyncpa [#allocation3], 0
    %s11 = scalar_lea.sflag [#allocation3], 1
    %12 = vsyncpa %s11, 0
    %13 = vsyncpa [#allocation5], 0
    %s14 = scalar_lea.sflag [#allocation5], 1
    %15 = vsyncpa %s14, 0
    loop: start=0, step=1, limit=4
    $region2: #{tpu_custom_call.1} parent=1 // loop_pre_header
      _
    $region3: #{tpu_custom_call.1} parent=1 // loop_header
      %s17 = sphi 0, %s21
      %p18 = scmp.ge.s32.totalorder %s17, 4
      %s24 = sphi 0, %s36
      %s25 = sphi 0, %s32
      %s26 = sphi 0, %s24
      %s27 = sphi 0, %s25
      %s28 = sphi 0, %s26
      %s29 = sphi 0, %s27
      %s41 = sphi 0, %s43
      %s44 = sphi 0, %s41
      %s45 = sphi 0, %s44
      %s61 = sphi 0, %s45
      %s65 = sphi 0, %s65
      %s67 = sphi 0, %s65
      %s68 = sphi 0, %s67
      %s82 = sphi 0, %s68
      %s86 = sphi 0, %s86
      %s88 = sphi 0, %s86
      %s89 = sphi 0, %s88
      %s103 = sphi 0, %s89
      %s111 = sphi 0, %s113
      %s114 = sphi 0, %s111
      %s115 = sphi 0, %s114
      %s131 = sphi 0, %s115
      %s139 = sphi 0, %s141
      %s142 = sphi 0, %s139
      %s143 = sphi 0, %s142
      %s159 = sphi 0, %s143
    $region4: #{tpu_custom_call.1} parent=1 // loop_header_branch
      %20 = sbr.rel (%p18) target = $region8
    $region5: #{tpu_custom_call.1} parent=1 // loop_body
      %s22 = ssub.s32 %s17, 1
      %s23 = ssub.s32 %s17, 2
      %s30 = sadd.s32 1, %s25
      %p31 = scmp.ge.s32.totalorder %s30, 1
      %s32 = scalar_select %p31, 0, %s30
      %s33 = sadd.s32 1, %s24
      %s34 = scalar_select %p31, %s33, %s24
      %p35 = scmp.ge.s32.totalorder %s34, 2
      %s36 = scalar_select %p35, 0, %s34
      %s37 = ssub.s32 %s24, %s36
      %s38 = ssub.s32 %s25, %s32
      %s39 = sor.u32 %s37, %s38
      %p40 = scmp.eq.s32.totalorder %s39, 0
      %s42 = sadd.s32 %s41, 1
      %s43 = scalar_select %p40, %s41, %s42
      %p46 = pneg %p40
      %p47 = scmp.eq.s32.totalorder %s17, 1
      %p48 = por %p46, %p47
      %p49 = scmp.ne.s32.totalorder %s41, %s44
      %p50 = scmp.eq.s32.totalorder %s17, 0
      %p51 = por %p49, %p50
      %p52 = scmp.ne.s32.totalorder %s41, %s44
      %p53 = scmp.eq.s32.totalorder %s22, 1
      %p54 = por %p52, %p53
      %p55 = scmp.ne.s32.totalorder %s44, %s45
      %p56 = scmp.eq.s32.totalorder %s22, 0
      %p57 = por %p55, %p56
      %p58 = scmp.ne.s32.totalorder %s44, %s45
      %p59 = scmp.eq.s32.totalorder %s23, 1
      %p60 = por %p58, %p59
      %p62 = scmp.ne.s32.totalorder %s45, %s61
      %p63 = scmp.eq.s32.totalorder %s23, 0
      %p64 = por %p62, %p63
      %s66 = sadd.s32 %s65, 1
      %p69 = scmp.eq.s32.totalorder %s17, 1
      %p70 = scmp.ne.s32.totalorder %s65, %s67
      %p71 = scmp.eq.s32.totalorder %s17, 0
      %p72 = por %p70, %p71
      %p73 = scmp.ne.s32.totalorder %s65, %s67
      %p74 = scmp.eq.s32.totalorder %s22, 1
      %p75 = por %p73, %p74
      %p76 = scmp.ne.s32.totalorder %s67, %s68
      %p77 = scmp.eq.s32.totalorder %s22, 0
      %p78 = por %p76, %p77
      %p79 = scmp.ne.s32.totalorder %s67, %s68
      %p80 = scmp.eq.s32.totalorder %s23, 1
      %p81 = por %p79, %p80
      %p83 = scmp.ne.s32.totalorder %s68, %s82
      %p84 = scmp.eq.s32.totalorder %s23, 0
      %p85 = por %p83, %p84
      %s87 = sadd.s32 %s86, 1
      %p90 = scmp.eq.s32.totalorder %s17, 1
      %p91 = scmp.ne.s32.totalorder %s86, %s88
      %p92 = scmp.eq.s32.totalorder %s17, 0
      %p93 = por %p91, %p92
      %p94 = scmp.ne.s32.totalorder %s86, %s88
      %p95 = scmp.eq.s32.totalorder %s22, 1
      %p96 = por %p94, %p95
      %p97 = scmp.ne.s32.totalorder %s88, %s89
      %p98 = scmp.eq.s32.totalorder %s22, 0
      %p99 = por %p97, %p98
      %p100 = scmp.ne.s32.totalorder %s88, %s89
      %p101 = scmp.eq.s32.totalorder %s23, 1
      %p102 = por %p100, %p101
      %p104 = scmp.ne.s32.totalorder %s89, %s103
      %p105 = scmp.eq.s32.totalorder %s23, 0
      %p106 = por %p104, %p105
      %s107 = ssub.s32 %s24, %s36
      %s108 = ssub.s32 %s25, %s32
      %s109 = sor.u32 %s107, %s108
      %p110 = scmp.eq.s32.totalorder %s109, 0
      %s112 = sadd.s32 %s111, 1
      %s113 = scalar_select %p110, %s111, %s112
      %p116 = pneg %p110
      %p117 = scmp.eq.s32.totalorder %s17, 1
      %p118 = por %p116, %p117
      %p119 = scmp.ne.s32.totalorder %s111, %s114
      %p120 = scmp.eq.s32.totalorder %s17, 0
      %p121 = por %p119, %p120
      %p122 = scmp.ne.s32.totalorder %s111, %s114
      %p123 = scmp.eq.s32.totalorder %s22, 1
      %p124 = por %p122, %p123
      %p125 = scmp.ne.s32.totalorder %s114, %s115
      %p126 = scmp.eq.s32.totalorder %s22, 0
      %p127 = por %p125, %p126
      %p128 = scmp.ne.s32.totalorder %s114, %s115
      %p129 = scmp.eq.s32.totalorder %s23, 1
      %p130 = por %p128, %p129
      %p132 = scmp.ne.s32.totalorder %s115, %s131
      %p133 = scmp.eq.s32.totalorder %s23, 0
      %p134 = por %p132, %p133
      %s135 = ssub.s32 %s24, %s36
      %s136 = ssub.s32 %s25, %s32
      %s137 = sor.u32 %s135, %s136
      %p138 = scmp.eq.s32.totalorder %s137, 0
      %s140 = sadd.s32 %s139, 1
      %s141 = scalar_select %p138, %s139, %s140
      %p144 = pneg %p138
      %p145 = scmp.eq.s32.totalorder %s17, 1
      %p146 = por %p144, %p145
      %p147 = scmp.ne.s32.totalorder %s139, %s142
      %p148 = scmp.eq.s32.totalorder %s17, 0
      %p149 = por %p147, %p148
      %p150 = scmp.ne.s32.totalorder %s139, %s142
      %p151 = scmp.eq.s32.totalorder %s22, 1
      %p152 = por %p150, %p151
      %p153 = scmp.ne.s32.totalorder %s142, %s143
      %p154 = scmp.eq.s32.totalorder %s22, 0
      %p155 = por %p153, %p154
      %p156 = scmp.ne.s32.totalorder %s142, %s143
      %p157 = scmp.eq.s32.totalorder %s23, 1
      %p158 = por %p156, %p157
      %p160 = scmp.ne.s32.totalorder %s143, %s159
      %p161 = scmp.eq.s32.totalorder %s23, 0
      %p162 = por %p160, %p161
      %p163 = scmp.le.s32.totalorder 1, %s17
      %p164 = scmp.lt.s32.totalorder %s17, 3
      %p165 = pnand %p163, %p164
      %p166 = pneg %p165
      // Predicated region
      $region9: #{tpu_custom_call.1} parent=5 // pred_check
        _
      $region10: #{tpu_custom_call.1} parent=5 // pred_check_branch
        %168 = sbr.rel (%p165) target = $region12
      $region11: #{tpu_custom_call.1} parent=5 // pred_region
        %s169 = ssub.s32 %s17, 1
        // Predicated region
        $region13: #{tpu_custom_call.1} parent=11 // pred_check
          %p170 = pneg %p78
        $region14: #{tpu_custom_call.1} parent=11 // pred_check_branch
          %172 = sbr.rel (%p170) target = $region16
        $region15: #{tpu_custom_call.1} parent=11 // pred_region
          _
        $region16: #{tpu_custom_call.1} parent=11 // pred_fallthru
          _
        // Predicated region
        $region17: #{tpu_custom_call.1} parent=11 // pred_check
          %p173 = pneg %p99
        $region18: #{tpu_custom_call.1} parent=11 // pred_check_branch
          %175 = sbr.rel (%p173) target = $region20
        $region19: #{tpu_custom_call.1} parent=11 // pred_region
          _
        $region20: #{tpu_custom_call.1} parent=11 // pred_fallthru
          _
      $region12: #{tpu_custom_call.1} parent=5 // pred_fallthru
        _
      %p176 = scmp.lt.s32.totalorder %s17, 2
      // Predicated region
      $region21: #{tpu_custom_call.1} parent=5 // pred_check
        %p177 = pneg %p176
      $region22: #{tpu_custom_call.1} parent=5 // pred_check_branch
        %179 = sbr.rel (%p177) target = $region24
      $region23: #{tpu_custom_call.1} parent=5 // pred_region
        // Predicated region
        $region25: #{tpu_custom_call.1} parent=23 // pred_check
          %p180 = pneg %p51
        $region26: #{tpu_custom_call.1} parent=23 // pred_check_branch
          %182 = sbr.rel (%p180) target = $region28
        $region27: #{tpu_custom_call.1} parent=23 // pred_region
          %s183 = smul.u32 2, %s25
          %p184 = scmp.lt.s32.totalorder %s24, 1
          %s185 = scalar_select %p184, %s24, 1
          %p186 = scmp.lt.s32.totalorder %s183, 1
          %s187 = scalar_select %p186, %s183, 1
          %s188 = smul.addr %s185, 2
          %s189 = sadd.s32 %s187, %s188
          %s190 = smul.addr %s189, 4
          %s191 = scalar_lea.vmem %s0, %s190
          %s192 = smul.u32 2, %s25
        $region28: #{tpu_custom_call.1} parent=23 // pred_fallthru
          _
      $region24: #{tpu_custom_call.1} parent=5 // pred_fallthru
        _
      %p193 = scmp.le.s32.totalorder 1, %s17
      %p194 = scmp.lt.s32.totalorder %s17, 3
      %p195 = pnand %p193, %p194
      %p196 = pneg %p195
      // Predicated region
      $region29: #{tpu_custom_call.1} parent=5 // pred_check
        _
      $region30: #{tpu_custom_call.1} parent=5 // pred_check_branch
        %198 = sbr.rel (%p195) target = $region32
      $region31: #{tpu_custom_call.1} parent=5 // pred_region
        %s199 = ssub.s32 %s17, 1
        %s200 = smul.u32 2, %s27
        %p201 = scmp.lt.s32.totalorder %s26, 1
        %s202 = scalar_select %p201, %s26, 1
        %p203 = scmp.lt.s32.totalorder %s200, 1
        %s204 = scalar_select %p203, %s200, 1
        %s205 = smul.addr %s202, 2
        %s206 = sadd.s32 %s204, %s205
        %s207 = smul.addr %s206, 4
        %s208 = scalar_lea.vmem %s0, %s207
        %p209 = pneg %p57
        %p210 = pneg %p54
        %p211 = pneg %p78
        %p212 = pneg %p75
        %p213 = pneg %p99
        %p214 = pneg %p96
        %p215 = pneg %p127
        %p216 = pneg %p124
        %s217 = sand.u32 %s114, 1
        %s218 = scalar_lea.sflag [#allocation3], %s217
        %s219 = sand.u32 %s114, 1
        %s220 = smul.addr %s219, 16
        %s221 = scalar_lea.vmem [#allocation2], %s220
        %p222 = pneg %p155
        %p223 = pneg %p152
        %s224 = sand.u32 %s142, 1
        %s225 = scalar_lea.sflag [#allocation5], %s224
        %s226 = sand.u32 %s142, 1
        %s227 = smul.addr %s226, 8
        %s228 = scalar_lea.vmem [#allocation4], %s227
        %s229 = smul.u32 2, %s27
        %p230 = scmp.lt.s32.totalorder %s26, 1
        %s231 = scalar_select %p230, %s26, 1
        %p232 = scmp.lt.s32.totalorder %s229, 1
        %s233 = scalar_select %p232, %s229, 1
        %s234 = smul.addr %s231, 2
        %s235 = sadd.s32 %s233, %s234
        %s236 = smul.addr %s235, 4
        %s237 = scalar_lea.vmem %s0, %s236
        %s238 = smul.u32 2, %s27
        %s239 = smul.u32 2, %s27
        %s240 = smul.u32 2, %s27
        %v241 = vld [vmem:[%s1] sm:$0xff]
        %v242 = vld [vmem:[%s1 + $0x8] sm:$0xf]
        %v243 = vld [vmem:[%s2] sm:$0xff]
        %v244 = vld [vmem:[%s2 + $0x8] sm:$0xf]
        %v245 = vld [vmem:[%s237] sm:$0xff]
        %247 = vset.pattern.permute.xlu0 0
        %248 = vperm.xlu0 %247, %v243
        %v249 = vpop.permute.xlu0 %248
        %252 = vset.pattern.permute.xlu0 0
        %253 = vperm.xlu0 %252, %v244
        %v254 = vpop.permute.xlu0 %253
        %v257 = vcombine.high %v245, %v245
        %vm258 = vcmask 31744
        %v260 = vsel %vm258, %v241, 0
        %v263 = vsel %vm258, %v242, 0
        %vm265 = vcmask 1043456
        %v266 = vsel %vm265, %v245, 0
        %v268 = vsel %vm265, %v257, 0
        %270 = vmatprep.subr.mxu0 0.0
        %271 = vmatpush1.msra.mxu0 0.0
        %272 = vmatprep.subr.mxu0 0.0
        %273 = vmatpush1.msra.mxu0 0.0
        %274 = vmatprep.subr.mxu0 0.0
        %275 = vmatpush1.msra.mxu0 0.0
        %276 = vmatprep.subr.mxu0 0.0
        %277 = vmatpush1.msra.mxu0 0.0
        %278 = vmatprep.subr.mxu0 0.0
        %279 = vmatpush1.msra.mxu0 0.0
        %280 = vmatprep.subr.mxu0 0.0
        %281 = vmatpush1.msra.mxu0 0.0
        %282 = vmatprep.subr.mxu0 0.0
        %283 = vmatpush1.msra.mxu0 0.0
        %284 = vmatprep.subr.mxu0 0.0
        %285 = vmatpush1.msra.mxu0 0.0
        %286 = vmatprep.subr.mxu0 0.0
        %287 = vmatpush1.msra.mxu0 0.0
        %288 = vmatprep.subr.mxu0 0.0
        %289 = vmatpush1.msra.mxu0 0.0
        %290 = vmatprep.subr.mxu0 0.0
        %291 = vmatpush1.msra.mxu0 0.0
        %292 = vmatprep.subr.mxu0 0.0
        %293 = vmatpush1.msra.mxu0 0.0
        %294 = vmatprep.subr.mxu0 0.0
        %295 = vmatpush1.msra.mxu0 0.0
        %296 = vmatprep.subr.mxu0 0.0
        %297 = vmatpush1.msra.mxu0 0.0
        %298 = vmatprep.subr.mxu0 0.0
        %299 = vmatpush1.msra.mxu0 0.0
        %300 = vmatprep.subr.mxu0 %v268
        %301 = vmatpush1.msra.mxu0 %v266
        %302 = vmatprep.subr.mxu0 0.0
        %303 = vmatpush2.msra.mxu0 0.0
        %304 = vmatprep.subr.mxu0 0.0
        %305 = vmatpush2.msra.mxu0 0.0
        %306 = vmatprep.subr.mxu0 0.0
        %307 = vmatpush2.msra.mxu0 0.0
        %308 = vmatprep.subr.mxu0 0.0
        %309 = vmatpush2.msra.mxu0 0.0
        %310 = vmatprep.subr.mxu0 0.0
        %311 = vmatpush2.msra.mxu0 0.0
        %312 = vmatprep.subr.mxu0 0.0
        %313 = vmatpush2.msra.mxu0 0.0
        %314 = vmatprep.subr.mxu0 0.0
        %315 = vmatpush2.msra.mxu0 0.0
        %316 = vmatprep.subr.mxu0 0.0
        %317 = vmatpush2.msra.mxu0 0.0
        %318 = vmatprep.subr.mxu0 0.0
        %319 = vmatpush2.msra.mxu0 0.0
        %320 = vmatprep.subr.mxu0 0.0
        %321 = vmatpush2.msra.mxu0 0.0
        %322 = vmatprep.subr.mxu0 0.0
        %323 = vmatpush2.msra.mxu0 0.0
        %324 = vmatprep.subr.mxu0 0.0
        %325 = vmatpush2.msra.mxu0 0.0
        %326 = vmatprep.subr.mxu0 0.0
        %327 = vmatpush2.msra.mxu0 0.0
        %328 = vmatprep.subr.mxu0 0.0
        %329 = vmatpush2.msra.mxu0 0.0
        %330 = vmatprep.subr.mxu0 0.0
        %331 = vmatpush2.msra.mxu0 0.0
        %332 = vmatprep.subr.mxu0 0.0
        %333 = vmatpush2.msra.mxu0 0.0
        %334 = vmatprep.mubr.f32.mxu0 0.0
        %335 = vmatmul.mubr.f32.gmra.mxu0 %v260
        %v336 = vpop.f32.mrf.mxu0
        %v337 = vadd.f32 %v249, %v336
        %v338 = vpop.f32.mrf.mxu0
        %v339 = vadd.f32 %v249, %v338
        %340 = vmatprep.mubr.f32.mxu0 0.0
        %341 = vmatmul.mubr.f32.gmra.mxu0 %v263
        %v342 = vpop.f32.mrf.mxu0
        %v343 = vadd.f32 %v254, %v342
        %v344 = vpop.f32.mrf.mxu0
        %v345 = vadd.f32 %v254, %v344
        %346 = vdwg.mxu0
        %347 = vst [vmem:[%s221] sm:$0xff] %v337
        %348 = vst [vmem:[%s221 + $0x8] sm:$0xff] %v339
        %v351 = vcombine.low %v343, %v345
        %353 = vst [vmem:[%s228] sm:$0xff] %v351
        %s354 = sand.u32 %s114, 1
        %s355 = scalar_lea.sflag [#allocation3], %s354
        %s356 = sand.u32 %s114, 1
        %s357 = smul.addr %s356, 16
        %s358 = scalar_lea.vmem [#allocation2], %s357
        %s359 = sand.u32 %s142, 1
        %s360 = scalar_lea.sflag [#allocation5], %s359
        %s361 = sand.u32 %s142, 1
        %s362 = smul.addr %s361, 8
        %s363 = scalar_lea.vmem [#allocation4], %s362
        // Predicated region
        $region33: #{tpu_custom_call.1} parent=31 // pred_check
          %p364 = pneg %p124
        $region34: #{tpu_custom_call.1} parent=31 // pred_check_branch
          %366 = sbr.rel (%p364) target = $region36
        $region35: #{tpu_custom_call.1} parent=31 // pred_region
          %s367 = smul.u32 2, %s27
          %s369 = ssub.s32 256, 256
          %370 = vsyncadd %s355, %s369
          %s371 = smul.addr %s26, 2
          %s372 = sadd.s32 %s367, %s371
          %s373 = smul.addr %s372, 128
          %s374 = scalar_lea.hbm %s3, %s373
          %s376 = sshll.u32 %s358, 4
          %s377 = int_to_ptr.vmem [resolvable:$true] %s376
          %379 = dma.vmem_to_hbm [thread:$0]  %s377, 256, %s374, %s355
        $region36: #{tpu_custom_call.1} parent=31 // pred_fallthru
          _
        // Predicated region
        $region37: #{tpu_custom_call.1} parent=31 // pred_check
          %p380 = pneg %p152
        $region38: #{tpu_custom_call.1} parent=31 // pred_check_branch
          %382 = sbr.rel (%p380) target = $region40
        $region39: #{tpu_custom_call.1} parent=31 // pred_region
          %s383 = smul.u32 2, %s27
          %s385 = ssub.s32 128, 128
          %386 = vsyncadd %s360, %s385
          %s387 = smul.addr %s26, 2
          %s388 = sadd.s32 %s383, %s387
          %s389 = smul.addr %s388, 64
          %s390 = scalar_lea.hbm %s4, %s389
          %s392 = sshll.u32 %s363, 4
          %s393 = int_to_ptr.vmem [resolvable:$true] %s392
          %395 = dma.vmem_to_hbm [thread:$0]  %s393, 128, %s390, %s360
        $region40: #{tpu_custom_call.1} parent=31 // pred_fallthru
          _
      $region32: #{tpu_custom_call.1} parent=5 // pred_fallthru
        _
      %p396 = scmp.le.s32.totalorder 2, %s17
      // Predicated region
      $region41: #{tpu_custom_call.1} parent=5 // pred_check
        %p397 = pneg %p396
      $region42: #{tpu_custom_call.1} parent=5 // pred_check_branch
        %399 = sbr.rel (%p397) target = $region44
      $region43: #{tpu_custom_call.1} parent=5 // pred_region
        %s400 = ssub.s32 %s17, 2
        // Predicated region
        $region45: #{tpu_custom_call.1} parent=43 // pred_check
          %p401 = pneg %p130
        $region46: #{tpu_custom_call.1} parent=43 // pred_check_branch
          %403 = sbr.rel (%p401) target = $region48
        $region47: #{tpu_custom_call.1} parent=43 // pred_region
          %s404 = sand.u32 %s115, 1
          %s405 = scalar_lea.sflag [#allocation3], %s404
          %s406 = sand.u32 %s115, 1
          %s407 = smul.addr %s406, 16
          %s408 = scalar_lea.vmem [#allocation2], %s407
          %409 = dma.done %s405, 256
        $region48: #{tpu_custom_call.1} parent=43 // pred_fallthru
          _
        // Predicated region
        $region49: #{tpu_custom_call.1} parent=43 // pred_check
          %p410 = pneg %p158
        $region50: #{tpu_custom_call.1} parent=43 // pred_check_branch
          %412 = sbr.rel (%p410) target = $region52
        $region51: #{tpu_custom_call.1} parent=43 // pred_region
          %s413 = sand.u32 %s143, 1
          %s414 = scalar_lea.sflag [#allocation5], %s413
          %s415 = sand.u32 %s143, 1
          %s416 = smul.addr %s415, 8
          %s417 = scalar_lea.vmem [#allocation4], %s416
          %418 = dma.done %s414, 128
        $region52: #{tpu_custom_call.1} parent=43 // pred_fallthru
          _
      $region44: #{tpu_custom_call.1} parent=5 // pred_fallthru
        _
    $region6: #{tpu_custom_call.1} parent=1 // loop_footer
      %s21 = sadd.s32 1, %s17
    $region7: #{tpu_custom_call.1} parent=1 // loop_footer_branch
      %16 = sbr.rel target = $region3
    $region8: #{tpu_custom_call.1} parent=1 // loop_exit
      _
    %419 = vsyncpa [#allocation3], 1
    %s420 = scalar_lea.sflag [#allocation3], 1
    %421 = vsyncpa %s420, 1
    %422 = vsyncpa [#allocation5], 1
    %s423 = scalar_lea.sflag [#allocation5], 1
    %424 = vsyncpa %s423, 1

</llo_original>
